<compile_context>
chip_gen: v5e
topology: v5e:2x2
jax: 0.10.0
libtpu: 0.0.40
codegen_flags: <defaults>
</compile_context>

<pallas_src>
import functools

import jax
import jax.numpy as jnp
from jax import lax
from jax.experimental import pallas as pl
from jax.experimental.pallas import tpu as pltpu

EPS = 1e-5  # torch default eps for GroupNorm / LayerNorm


def _torch_head_view(x):
    """Reproduce torch's  X.view(hd, L).transpose(0, 1).reshape(h, d, L)  for one
    sample, returned as a 2-D (hd, L) array whose row r corresponds to the
    (head, d) pair r = head*d + d_idx.

    Implemented with a 2-D transpose + static slices + concatenates only (these are
    safe Mosaic lowerings); works for any hd, L."""
    hd, L = x.shape
    xt = x.T  # (L, hd); its row-major flat order == torch's flat order after transpose
    rows = []
    for r in range(hd):
        pos, end = r * L, (r + 1) * L
        pieces = []
        while pos < end:
            rr, cc = pos // hd, pos % hd
            take = min(hd - cc, end - pos)
            pieces.append(xt[rr:rr + 1, cc:cc + take])
            pos += take
        rows.append(pieces[0] if len(pieces) == 1 else jnp.concatenate(pieces, axis=1))
    return jnp.concatenate(rows, axis=0)  # (hd, L)


def _fused_kernel(n_head, d_head, compute_dtype,
                  eta_ref, ft_ref,
                  wq_ref, bq_ref, wv_ref, bv_ref, wk_ref, bk_ref,
                  wfc_ref, bfc_ref, out_ref):
    # eta_ref: (D, L)   ft_ref: (N, S)   out_ref: (D, L)
    cdt = compute_dtype

    # ---- GroupNorm(1, D): stats over all (C, H, W) of this sample (affine folded) ---
    eta = eta_ref[...]
    mu = jnp.mean(eta, keepdims=True)
    var = jnp.mean((eta - mu) ** 2, keepdims=True)
    eta_n = ((eta - mu) * lax.rsqrt(var + EPS)).astype(cdt)

    # ---- LayerNorm(S) over the last axis of Ft0 (affine folded) ---------------------
    ft = ft_ref[...]
    fmu = jnp.mean(ft, axis=1, keepdims=True)
    fvar = jnp.mean((ft - fmu) ** 2, axis=1, keepdims=True)
    ft_n = ((ft - fmu) * lax.rsqrt(fvar + EPS)).astype(cdt)

    # ---- projections (norm affines and 1/sqrt(d) already folded into weights) -------
    q = jnp.dot(wq_ref[...].astype(cdt), eta_n,
                preferred_element_type=jnp.float32) + bq_ref[...]          # (hd, L)
    v = jnp.dot(wv_ref[...].astype(cdt), eta_n,
                preferred_element_type=jnp.float32) + bv_ref[...]          # (hd, L)
    k = lax.dot_general(wk_ref[...].astype(cdt), ft_n,
                        (((1,), (1,)), ((), ())),
                        preferred_element_type=jnp.float32) + bk_ref[...]  # (hd, N)

    # ---- torch view/transpose/reshape index gymnastics, in-register ------------------
    q_r = _torch_head_view(q)   # (hd, L), rows ordered (head, d)
    v_r = _torch_head_view(v)   # (hd, L)
    # K.transpose(1,2).reshape(h, d, N) is the natural head split of (hd, N).

    # ---- attention + fused fc ---------------------------------------------------------
    z_rows = []
    for hi in range(n_head):                                # static unroll over heads
        sl = slice(hi * d_head, (hi + 1) * d_head)
        qh, kh, vh = q_r[sl, :], k[sl, :], v_r[sl, :]       # (d,L), (d,N), (d,L)
        # s[m, n] = sum_d kh[d, m] * qh[d, n]  == QK[n, m] / sqrt(d)
        s = lax.dot_general(kh.astype(cdt), qh.astype(cdt),
                            (((0,), (0,)), ((), ())),
                            preferred_element_type=jnp.float32)            # (N, L)
        # torch Softmax(dim=2): softmax over the spatial/query axis n (axis=1 of s)
        s_max = jnp.max(s, axis=1, keepdims=True)
        e = jnp.exp(s - s_max)                                             # (N, L)
        inv = pl.reciprocal(jnp.sum(e, axis=1, keepdims=True))             # (N, 1)
        # Z[b,n,h,d] = V[b,h,d,n] * sum_k A[b,h,n,k]; colsum of softmax without
        # materializing the normalized (N, L) matrix (vector reciprocal + multiply).
        asum = jnp.sum(e * inv, axis=0, keepdims=True)                     # (1, L)
        z_rows.append(vh * asum)                                           # (d, L)

    zt = jnp.concatenate(z_rows, axis=0)                                   # (hd, L)
    # single fc matmul over the full hd contraction, lane-dense (D, L) output
    out_ref[...] = (jnp.dot(wfc_ref[...].astype(cdt), zt.astype(cdt),
                            preferred_element_type=jnp.float32)
                    + bfc_ref[...]).astype(out_ref.dtype)


def spatial_attn_net(eta, ft, params, n_head, compute_dtype=jnp.float32):
    """Forward pass of SpatialAttnNet (study=False). Returns (Z, None)."""
    B, D, H, W = eta.shape
    L = H * W
    N, S = ft.shape[1], ft.shape[2]
    d = D // n_head
    hd = d * n_head
    inv_sqrtd = 1.0 / (float(d) ** 0.5)

    eta_flat = eta.reshape(B, D, L).astype(jnp.float32)
    ft = ft.astype(jnp.float32)

    wq, wv, wk, wfc = params["wq"], params["wv"], params["wk"], params["wfc"]
    g_spa, b_spa = params["gamma_spa"], params["beta_spa"]
    g_ftr, b_ftr = params["gamma_ftr"], params["beta_ftr"]

    # Fold norm affines + 1/sqrt(d) into the projection weights (trace time, tiny).
    wq_f = (wq * g_spa[None, :]) * inv_sqrtd            # (hd, D)
    bq_f = (wq @ b_spa)[:, None] * inv_sqrtd            # (hd, 1)
    wv_f = wv * g_spa[None, :]                          # (hd, D)
    bv_f = (wv @ b_spa)[:, None]                        # (hd, 1)
    wk_f = wk * g_ftr[None, :]                          # (hd, S)
    bk_f = (wk @ b_ftr)[:, None]                        # (hd, 1)
    bfc = params["bfc"][:, None]                        # (D, 1)

    kernel = functools.partial(_fused_kernel, n_head, d, compute_dtype)
    z = pl.pallas_call(
        kernel,
        grid=(B,),
        in_specs=[
            pl.BlockSpec((None, D, L), lambda b: (b, 0, 0)),   # eta (per sample)
            pl.BlockSpec((None, N, S), lambda b: (b, 0, 0)),   # Ft0 (per sample)
            pl.BlockSpec((hd, D), lambda b: (0, 0)),           # wq (folded)
            pl.BlockSpec((hd, 1), lambda b: (0, 0)),           # bq
            pl.BlockSpec((hd, D), lambda b: (0, 0)),           # wv
            pl.BlockSpec((hd, 1), lambda b: (0, 0)),           # bv
            pl.BlockSpec((hd, S), lambda b: (0, 0)),           # wk
            pl.BlockSpec((hd, 1), lambda b: (0, 0)),           # bk
            pl.BlockSpec((D, hd), lambda b: (0, 0)),           # wfc
            pl.BlockSpec((D, 1), lambda b: (0, 0)),            # bfc
        ],
        out_specs=pl.BlockSpec((None, D, L), lambda b: (b, 0, 0)),
        out_shape=jax.ShapeDtypeStruct((B, D, L), jnp.float32),
        compiler_params=pltpu.CompilerParams(dimension_semantics=("parallel",)),
    )(eta_flat, ft, wq_f, bq_f, wv_f, bv_f, wk_f, bk_f, wfc, bfc)

    # (B, D, L) is already NCHW-contiguous -> free reshape, no transpose needed.
    return z.reshape(B, D, H, W), None  # study=False branch


# ---------------- pure-JAX reference (for self-check) -----------------------
def reference(eta, ft, p, n_head):
    B, D, H, W = eta.shape
    L = H * W
    d = D // n_head
    hd = d * n_head
    N = ft.shape[1]
    x = eta.reshape(B, -1)
    mu = x.mean(axis=1, keepdims=True)
    var = ((x - mu) ** 2).mean(axis=1, keepdims=True)
    xn = ((x - mu) / jnp.sqrt(var + EPS)).reshape(B, D, H, W)
    xn = xn * p["gamma_spa"][None, :, None, None] + p["beta_spa"][None, :, None, None]
    fmu = ft.mean(axis=-1, keepdims=True)
    fvar = ((ft - fmu) ** 2).mean(axis=-1, keepdims=True)
    fn = (ft - fmu) / jnp.sqrt(fvar + EPS) * p["gamma_ftr"] + p["beta_ftr"]
    Q = jnp.einsum("oc,bchw->bohw", p["wq"], xn).reshape(B, hd, L)
    V = jnp.einsum("oc,bchw->bohw", p["wv"], xn).reshape(B, hd, L)
    K = jnp.einsum("bns,os->bno", fn, p["wk"])
    Qr = jnp.swapaxes(Q, 1, 2).reshape(B, n_head, d, L)
    Vr = jnp.swapaxes(V, 1, 2).reshape(B, n_head, d, L)
    Kr = jnp.swapaxes(K, 1, 2).reshape(B, n_head, d, N)
    QK = jnp.einsum("bhdn,bhdm->bhnm", Qr, Kr) / (d ** 0.5)
    A = jax.nn.softmax(QK, axis=2)
    Z = jnp.einsum("bhnk,bhdn->bnhd", A, Vr)
    Z = Z.reshape(B, L, hd)
    Z = Z @ p["wfc"].T + p["bfc"]
    return jnp.swapaxes(Z, 1, 2).reshape(B, D, H, W)


def init_params(key, D, hd, S):
    ks = jax.random.split(key, 9)

    def xavier(k, shape):
        fan_out, fan_in = shape
        a = (6.0 / (fan_in + fan_out)) ** 0.5
        return jax.random.uniform(k, shape, jnp.float32, -a, a)

    return dict(
        wq=xavier(ks[0], (hd, D)),          # Conv2d(D, hd, 1).weight squeezed
        wv=xavier(ks[1], (hd, D)),
        wk=xavier(ks[2], (hd, S)),          # Linear(S, hd).weight
        wfc=xavier(ks[3], (D, hd)),         # Linear(hd, D).weight
        bfc=jax.random.uniform(ks[4], (D,), jnp.float32, -0.1, 0.1),
        gamma_spa=1.0 + 0.1 * jax.random.normal(ks[5], (D,), jnp.float32),
        beta_spa=0.1 * jax.random.normal(ks[6], (D,), jnp.float32),
        gamma_ftr=1.0 + 0.1 * jax.random.normal(ks[7], (S,), jnp.float32),
        beta_ftr=0.1 * jax.random.normal(ks[8], (S,), jnp.float32),
    )


if __name__ == "__main__":
    key = jax.random.PRNGKey(0)
    B, H, W, D = 2, 4, 4, 8       # cube_size = (4, 4, 8), L = 16
    n_head = 2                    # d = 4, hd = 8
    N, S = 8, 16                  # Ft0: [B, n, M=S], n_state = 16
    hd = (D // n_head) * n_head

    k1, k2, k3 = jax.random.split(key, 3)
    eta = jax.random.normal(k1, (B, D, H, W), jnp.float32)
    ft = jax.random.normal(k2, (B, N, S), jnp.float32)
    params = init_params(k3, D, hd, S)

    z, a = spatial_attn_net(eta, ft, params, n_head)
    z = jax.block_until_ready(z)

    assert z.shape == (B, D, H, W), z.shape
    z_ref = reference(eta, ft, params, n_head)
    if not bool(jnp.allclose(z, z_ref, rtol=1e-4, atol=1e-4)):
        raise AssertionError("Pallas output does not match reference")
    print("KERNEL_OK")
</pallas_src>

<mosaic_0001>
module attributes {stable_mosaic.version = 11 : i64} {
  func.func @_fused_kernel(%arg0: i32, %arg1: memref<1x8x16xf32, #tpu.memory_space<vmem>>, %arg2: memref<1x8x16xf32, #tpu.memory_space<vmem>>, %arg3: memref<8x8xf32, #tpu.memory_space<vmem>>, %arg4: memref<8x1xf32, #tpu.memory_space<vmem>>, %arg5: memref<8x8xf32, #tpu.memory_space<vmem>>, %arg6: memref<8x1xf32, #tpu.memory_space<vmem>>, %arg7: memref<8x16xf32, #tpu.memory_space<vmem>>, %arg8: memref<8x1xf32, #tpu.memory_space<vmem>>, %arg9: memref<8x8xf32, #tpu.memory_space<vmem>>, %arg10: memref<8x1xf32, #tpu.memory_space<vmem>>, %arg11: memref<1x8x16xf32, #tpu.memory_space<vmem>>) attributes {dimension_semantics = [#tpu.dimension_semantics<parallel>], iteration_bounds = array<i64: 2>, scalar_prefetch = 0 : i64, scratch_operands = 0 : i64, tpu.core_type = #tpu.core_type<tc>, window_params = [{transform_indices = @transform_0, window_bounds = array<i64: 1, 8, 16>}, {transform_indices = @transform_1, window_bounds = array<i64: 1, 8, 16>}, {pipeline_mode = #tpu.pipeline_mode<synchronous>, transform_indices = @transform_2, window_bounds = array<i64: 8, 8>}, {pipeline_mode = #tpu.pipeline_mode<synchronous>, transform_indices = @transform_3, window_bounds = array<i64: 8, 1>}, {pipeline_mode = #tpu.pipeline_mode<synchronous>, transform_indices = @transform_4, window_bounds = array<i64: 8, 8>}, {pipeline_mode = #tpu.pipeline_mode<synchronous>, transform_indices = @transform_5, window_bounds = array<i64: 8, 1>}, {pipeline_mode = #tpu.pipeline_mode<synchronous>, transform_indices = @transform_6, window_bounds = array<i64: 8, 16>}, {pipeline_mode = #tpu.pipeline_mode<synchronous>, transform_indices = @transform_7, window_bounds = array<i64: 8, 1>}, {pipeline_mode = #tpu.pipeline_mode<synchronous>, transform_indices = @transform_8, window_bounds = array<i64: 8, 8>}, {pipeline_mode = #tpu.pipeline_mode<synchronous>, transform_indices = @transform_9, window_bounds = array<i64: 8, 1>}, {transform_indices = @transform_10, window_bounds = array<i64: 1, 8, 16>}]} {
    %c0 = arith.constant 0 : index
    %c0_0 = arith.constant 0 : index
    %c0_1 = arith.constant 0 : index
    %0 = vector.load %arg1[%c0, %c0_0, %c0_1] : memref<1x8x16xf32, #tpu.memory_space<vmem>>, vector<1x8x16xf32>
    %1 = vector.shape_cast %0 : vector<1x8x16xf32> to vector<8x16xf32>
    %2 = vector.shape_cast %1 : vector<8x16xf32> to vector<1x8x16xf32>
    %cst = arith.constant dense<0.000000e+00> : vector<1xf32>
    %3 = vector.multi_reduction <add>, %2, %cst [1, 2] : vector<1x8x16xf32> to vector<1xf32>
    %4 = vector.shape_cast %3 : vector<1xf32> to vector<1x1x1xf32>
    %5 = vector.extract %4[0, 0, 0] : f32 from vector<1x1x1xf32>
    %6 = vector.broadcast %5 : f32 to vector<1x1xf32>
    %cst_2 = arith.constant 1.280000e+02 : f32
    %7 = vector.broadcast %cst_2 : f32 to vector<1x1xf32>
    %8 = arith.divf %6, %7 : vector<1x1xf32>
    %9 = vector.broadcast %8 : vector<1x1xf32> to vector<8x16xf32>
    %10 = arith.subf %1, %9 : vector<8x16xf32>
    %11 = arith.mulf %10, %10 : vector<8x16xf32>
    %12 = vector.shape_cast %11 : vector<8x16xf32> to vector<1x8x16xf32>
    %cst_3 = arith.constant dense<0.000000e+00> : vector<1xf32>
    %13 = vector.multi_reduction <add>, %12, %cst_3 [1, 2] : vector<1x8x16xf32> to vector<1xf32>
    %14 = vector.shape_cast %13 : vector<1xf32> to vector<1x1x1xf32>
    %15 = vector.extract %14[0, 0, 0] : f32 from vector<1x1x1xf32>
    %16 = vector.broadcast %15 : f32 to vector<1x1xf32>
    %cst_4 = arith.constant 1.280000e+02 : f32
    %17 = vector.broadcast %cst_4 : f32 to vector<1x1xf32>
    %18 = arith.divf %16, %17 : vector<1x1xf32>
    %19 = vector.broadcast %8 : vector<1x1xf32> to vector<8x16xf32>
    %20 = arith.subf %1, %19 : vector<8x16xf32>
    %cst_5 = arith.constant 9.99999974E-6 : f32
    %21 = vector.broadcast %cst_5 : f32 to vector<1x1xf32>
    %22 = arith.addf %18, %21 : vector<1x1xf32>
    %23 = math.rsqrt %22 : vector<1x1xf32>
    %24 = vector.broadcast %23 : vector<1x1xf32> to vector<8x16xf32>
    %25 = arith.mulf %20, %24 : vector<8x16xf32>
    %c0_6 = arith.constant 0 : index
    %c0_7 = arith.constant 0 : index
    %c0_8 = arith.constant 0 : index
    %26 = vector.load %arg2[%c0_6, %c0_7, %c0_8] : memref<1x8x16xf32, #tpu.memory_space<vmem>>, vector<1x8x16xf32>
    %27 = vector.shape_cast %26 : vector<1x8x16xf32> to vector<8x16xf32>
    %cst_9 = arith.constant dense<0.000000e+00> : vector<8xf32>
    %28 = vector.multi_reduction <add>, %27, %cst_9 [1] : vector<8x16xf32> to vector<8xf32>
    %29 = vector.shape_cast %28 : vector<8xf32> to vector<8x1xf32>
    %cst_10 = arith.constant 1.600000e+01 : f32
    %30 = vector.broadcast %cst_10 : f32 to vector<8x1xf32>
    %31 = arith.divf %29, %30 : vector<8x1xf32>
    %32 = vector.broadcast %31 : vector<8x1xf32> to vector<8x16xf32>
    %33 = arith.subf %27, %32 : vector<8x16xf32>
    %34 = arith.mulf %33, %33 : vector<8x16xf32>
    %cst_11 = arith.constant dense<0.000000e+00> : vector<8xf32>
    %35 = vector.multi_reduction <add>, %34, %cst_11 [1] : vector<8x16xf32> to vector<8xf32>
    %36 = vector.shape_cast %35 : vector<8xf32> to vector<8x1xf32>
    %cst_12 = arith.constant 1.600000e+01 : f32
    %37 = vector.broadcast %cst_12 : f32 to vector<8x1xf32>
    %38 = arith.divf %36, %37 : vector<8x1xf32>
    %39 = vector.broadcast %31 : vector<8x1xf32> to vector<8x16xf32>
    %40 = arith.subf %27, %39 : vector<8x16xf32>
    %cst_13 = arith.constant 9.99999974E-6 : f32
    %41 = vector.broadcast %cst_13 : f32 to vector<8x1xf32>
    %42 = arith.addf %38, %41 : vector<8x1xf32>
    %43 = math.rsqrt %42 : vector<8x1xf32>
    %44 = vector.broadcast %43 : vector<8x1xf32> to vector<8x16xf32>
    %45 = arith.mulf %40, %44 : vector<8x16xf32>
    %c0_14 = arith.constant 0 : index
    %c0_15 = arith.constant 0 : index
    %46 = vector.load %arg3[%c0_14, %c0_15] : memref<8x8xf32, #tpu.memory_space<vmem>>, vector<8x8xf32>
    %cst_16 = arith.constant dense<0.000000e+00> : vector<8x16xf32>
    %47 = tpu.matmul %46, %25, %cst_16 {dimension_numbers = #tpu.dot_dimension_numbers<[1], [0], [0], [1], [0, 0, 1, 1], [], []>} : vector<8x8xf32>, vector<8x16xf32>, vector<8x16xf32> -> vector<8x16xf32>
    %c0_17 = arith.constant 0 : index
    %c0_18 = arith.constant 0 : index
    %48 = vector.load %arg4[%c0_17, %c0_18] : memref<8x1xf32, #tpu.memory_space<vmem>>, vector<8x1xf32>
    %49 = vector.broadcast %48 : vector<8x1xf32> to vector<8x16xf32>
    %50 = arith.addf %47, %49 : vector<8x16xf32>
    %c0_19 = arith.constant 0 : index
    %c0_20 = arith.constant 0 : index
    %51 = vector.load %arg5[%c0_19, %c0_20] : memref<8x8xf32, #tpu.memory_space<vmem>>, vector<8x8xf32>
    %cst_21 = arith.constant dense<0.000000e+00> : vector<8x16xf32>
    %52 = tpu.matmul %51, %25, %cst_21 {dimension_numbers = #tpu.dot_dimension_numbers<[1], [0], [0], [1], [0, 0, 1, 1], [], []>} : vector<8x8xf32>, vector<8x16xf32>, vector<8x16xf32> -> vector<8x16xf32>
    %c0_22 = arith.constant 0 : index
    %c0_23 = arith.constant 0 : index
    %53 = vector.load %arg6[%c0_22, %c0_23] : memref<8x1xf32, #tpu.memory_space<vmem>>, vector<8x1xf32>
    %54 = vector.broadcast %53 : vector<8x1xf32> to vector<8x16xf32>
    %55 = arith.addf %52, %54 : vector<8x16xf32>
    %c0_24 = arith.constant 0 : index
    %c0_25 = arith.constant 0 : index
    %56 = vector.load %arg7[%c0_24, %c0_25] : memref<8x16xf32, #tpu.memory_space<vmem>>, vector<8x16xf32>
    %cst_26 = arith.constant dense<0.000000e+00> : vector<8x8xf32>
    %57 = tpu.matmul %56, %45, %cst_26 {dimension_numbers = #tpu.dot_dimension_numbers<[1], [1], [0], [0], [0, 0, 1, 0], [], []>} : vector<8x16xf32>, vector<8x16xf32>, vector<8x8xf32> -> vector<8x8xf32>
    %c0_27 = arith.constant 0 : index
    %c0_28 = arith.constant 0 : index
    %58 = vector.load %arg8[%c0_27, %c0_28] : memref<8x1xf32, #tpu.memory_space<vmem>>, vector<8x1xf32>
    %59 = vector.broadcast %58 : vector<8x1xf32> to vector<8x8xf32>
    %60 = arith.addf %57, %59 : vector<8x8xf32>
    %61 = tpu.transpose %50, [1, 0] : vector<8x16xf32> -> vector<16x8xf32>
    %62 = vector.extract_strided_slice %61 {offsets = [0, 0], sizes = [1, 8], strides = [1, 1]} : vector<16x8xf32> to vector<1x8xf32>
    %63 = vector.extract_strided_slice %61 {offsets = [1, 0], sizes = [1, 8], strides = [1, 1]} : vector<16x8xf32> to vector<1x8xf32>
    %64 = tpu.concatenate %62, %63 in 1 : vector<1x8xf32>, vector<1x8xf32> -> vector<1x16xf32>
    %65 = vector.extract_strided_slice %61 {offsets = [2, 0], sizes = [1, 8], strides = [1, 1]} : vector<16x8xf32> to vector<1x8xf32>
    %66 = vector.extract_strided_slice %61 {offsets = [3, 0], sizes = [1, 8], strides = [1, 1]} : vector<16x8xf32> to vector<1x8xf32>
    %67 = tpu.concatenate %65, %66 in 1 : vector<1x8xf32>, vector<1x8xf32> -> vector<1x16xf32>
    %68 = vector.extract_strided_slice %61 {offsets = [4, 0], sizes = [1, 8], strides = [1, 1]} : vector<16x8xf32> to vector<1x8xf32>
    %69 = vector.extract_strided_slice %61 {offsets = [5, 0], sizes = [1, 8], strides = [1, 1]} : vector<16x8xf32> to vector<1x8xf32>
    %70 = tpu.concatenate %68, %69 in 1 : vector<1x8xf32>, vector<1x8xf32> -> vector<1x16xf32>
    %71 = vector.extract_strided_slice %61 {offsets = [6, 0], sizes = [1, 8], strides = [1, 1]} : vector<16x8xf32> to vector<1x8xf32>
    %72 = vector.extract_strided_slice %61 {offsets = [7, 0], sizes = [1, 8], strides = [1, 1]} : vector<16x8xf32> to vector<1x8xf32>
    %73 = tpu.concatenate %71, %72 in 1 : vector<1x8xf32>, vector<1x8xf32> -> vector<1x16xf32>
    %74 = vector.extract_strided_slice %61 {offsets = [8, 0], sizes = [1, 8], strides = [1, 1]} : vector<16x8xf32> to vector<1x8xf32>
    %75 = vector.extract_strided_slice %61 {offsets = [9, 0], sizes = [1, 8], strides = [1, 1]} : vector<16x8xf32> to vector<1x8xf32>
    %76 = tpu.concatenate %74, %75 in 1 : vector<1x8xf32>, vector<1x8xf32> -> vector<1x16xf32>
    %77 = vector.extract_strided_slice %61 {offsets = [10, 0], sizes = [1, 8], strides = [1, 1]} : vector<16x8xf32> to vector<1x8xf32>
    %78 = vector.extract_strided_slice %61 {offsets = [11, 0], sizes = [1, 8], strides = [1, 1]} : vector<16x8xf32> to vector<1x8xf32>
    %79 = tpu.concatenate %77, %78 in 1 : vector<1x8xf32>, vector<1x8xf32> -> vector<1x16xf32>
    %80 = vector.extract_strided_slice %61 {offsets = [12, 0], sizes = [1, 8], strides = [1, 1]} : vector<16x8xf32> to vector<1x8xf32>
    %81 = vector.extract_strided_slice %61 {offsets = [13, 0], sizes = [1, 8], strides = [1, 1]} : vector<16x8xf32> to vector<1x8xf32>
    %82 = tpu.concatenate %80, %81 in 1 : vector<1x8xf32>, vector<1x8xf32> -> vector<1x16xf32>
    %83 = vector.extract_strided_slice %61 {offsets = [14, 0], sizes = [1, 8], strides = [1, 1]} : vector<16x8xf32> to vector<1x8xf32>
    %84 = vector.extract_strided_slice %61 {offsets = [15, 0], sizes = [1, 8], strides = [1, 1]} : vector<16x8xf32> to vector<1x8xf32>
    %85 = tpu.concatenate %83, %84 in 1 : vector<1x8xf32>, vector<1x8xf32> -> vector<1x16xf32>
    %86 = tpu.concatenate %64, %67, %70, %73, %76, %79, %82, %85 in 0 : vector<1x16xf32>, vector<1x16xf32>, vector<1x16xf32>, vector<1x16xf32>, vector<1x16xf32>, vector<1x16xf32>, vector<1x16xf32>, vector<1x16xf32> -> vector<8x16xf32>
    %87 = tpu.transpose %55, [1, 0] : vector<8x16xf32> -> vector<16x8xf32>
    %88 = vector.extract_strided_slice %87 {offsets = [0, 0], sizes = [1, 8], strides = [1, 1]} : vector<16x8xf32> to vector<1x8xf32>
    %89 = vector.extract_strided_slice %87 {offsets = [1, 0], sizes = [1, 8], strides = [1, 1]} : vector<16x8xf32> to vector<1x8xf32>
    %90 = tpu.concatenate %88, %89 in 1 : vector<1x8xf32>, vector<1x8xf32> -> vector<1x16xf32>
    %91 = vector.extract_strided_slice %87 {offsets = [2, 0], sizes = [1, 8], strides = [1, 1]} : vector<16x8xf32> to vector<1x8xf32>
    %92 = vector.extract_strided_slice %87 {offsets = [3, 0], sizes = [1, 8], strides = [1, 1]} : vector<16x8xf32> to vector<1x8xf32>
    %93 = tpu.concatenate %91, %92 in 1 : vector<1x8xf32>, vector<1x8xf32> -> vector<1x16xf32>
    %94 = vector.extract_strided_slice %87 {offsets = [4, 0], sizes = [1, 8], strides = [1, 1]} : vector<16x8xf32> to vector<1x8xf32>
    %95 = vector.extract_strided_slice %87 {offsets = [5, 0], sizes = [1, 8], strides = [1, 1]} : vector<16x8xf32> to vector<1x8xf32>
    %96 = tpu.concatenate %94, %95 in 1 : vector<1x8xf32>, vector<1x8xf32> -> vector<1x16xf32>
    %97 = vector.extract_strided_slice %87 {offsets = [6, 0], sizes = [1, 8], strides = [1, 1]} : vector<16x8xf32> to vector<1x8xf32>
    %98 = vector.extract_strided_slice %87 {offsets = [7, 0], sizes = [1, 8], strides = [1, 1]} : vector<16x8xf32> to vector<1x8xf32>
    %99 = tpu.concatenate %97, %98 in 1 : vector<1x8xf32>, vector<1x8xf32> -> vector<1x16xf32>
    %100 = vector.extract_strided_slice %87 {offsets = [8, 0], sizes = [1, 8], strides = [1, 1]} : vector<16x8xf32> to vector<1x8xf32>
    %101 = vector.extract_strided_slice %87 {offsets = [9, 0], sizes = [1, 8], strides = [1, 1]} : vector<16x8xf32> to vector<1x8xf32>
    %102 = tpu.concatenate %100, %101 in 1 : vector<1x8xf32>, vector<1x8xf32> -> vector<1x16xf32>
    %103 = vector.extract_strided_slice %87 {offsets = [10, 0], sizes = [1, 8], strides = [1, 1]} : vector<16x8xf32> to vector<1x8xf32>
    %104 = vector.extract_strided_slice %87 {offsets = [11, 0], sizes = [1, 8], strides = [1, 1]} : vector<16x8xf32> to vector<1x8xf32>
    %105 = tpu.concatenate %103, %104 in 1 : vector<1x8xf32>, vector<1x8xf32> -> vector<1x16xf32>
    %106 = vector.extract_strided_slice %87 {offsets = [12, 0], sizes = [1, 8], strides = [1, 1]} : vector<16x8xf32> to vector<1x8xf32>
    %107 = vector.extract_strided_slice %87 {offsets = [13, 0], sizes = [1, 8], strides = [1, 1]} : vector<16x8xf32> to vector<1x8xf32>
    %108 = tpu.concatenate %106, %107 in 1 : vector<1x8xf32>, vector<1x8xf32> -> vector<1x16xf32>
    %109 = vector.extract_strided_slice %87 {offsets = [14, 0], sizes = [1, 8], strides = [1, 1]} : vector<16x8xf32> to vector<1x8xf32>
    %110 = vector.extract_strided_slice %87 {offsets = [15, 0], sizes = [1, 8], strides = [1, 1]} : vector<16x8xf32> to vector<1x8xf32>
    %111 = tpu.concatenate %109, %110 in 1 : vector<1x8xf32>, vector<1x8xf32> -> vector<1x16xf32>
    %112 = tpu.concatenate %90, %93, %96, %99, %102, %105, %108, %111 in 0 : vector<1x16xf32>, vector<1x16xf32>, vector<1x16xf32>, vector<1x16xf32>, vector<1x16xf32>, vector<1x16xf32>, vector<1x16xf32>, vector<1x16xf32> -> vector<8x16xf32>
    %113 = vector.extract_strided_slice %86 {offsets = [0, 0], sizes = [4, 16], strides = [1, 1]} : vector<8x16xf32> to vector<4x16xf32>
    %114 = vector.extract_strided_slice %60 {offsets = [0, 0], sizes = [4, 8], strides = [1, 1]} : vector<8x8xf32> to vector<4x8xf32>
    %115 = vector.extract_strided_slice %112 {offsets = [0, 0], sizes = [4, 16], strides = [1, 1]} : vector<8x16xf32> to vector<4x16xf32>
    %cst_29 = arith.constant dense<0.000000e+00> : vector<8x16xf32>
    %116 = tpu.matmul %114, %113, %cst_29 {dimension_numbers = #tpu.dot_dimension_numbers<[0], [0], [1], [1], [0, 1, 1, 1], [], []>} : vector<4x8xf32>, vector<4x16xf32>, vector<8x16xf32> -> vector<8x16xf32>
    %cst_30 = arith.constant dense<0xFF800000> : vector<8xf32>
    %117 = vector.multi_reduction <maximumf>, %116, %cst_30 [1] : vector<8x16xf32> to vector<8xf32>
    %118 = vector.shape_cast %117 : vector<8xf32> to vector<8x1xf32>
    %119 = vector.broadcast %118 : vector<8x1xf32> to vector<8x16xf32>
    %120 = arith.subf %116, %119 : vector<8x16xf32>
    %121 = math.exp %120 : vector<8x16xf32>
    %cst_31 = arith.constant dense<0.000000e+00> : vector<8xf32>
    %122 = vector.multi_reduction <add>, %121, %cst_31 [1] : vector<8x16xf32> to vector<8xf32>
    %123 = vector.shape_cast %122 : vector<8xf32> to vector<8x1xf32>
    %124 = tpu.reciprocal %123 : vector<8x1xf32> -> vector<8x1xf32>
    %125 = vector.broadcast %124 : vector<8x1xf32> to vector<8x16xf32>
    %126 = arith.mulf %121, %125 : vector<8x16xf32>
    %cst_32 = arith.constant dense<0.000000e+00> : vector<16xf32>
    %127 = vector.multi_reduction <add>, %126, %cst_32 [0] : vector<8x16xf32> to vector<16xf32>
    %128 = vector.shape_cast %127 : vector<16xf32> to vector<1x16xf32>
    %129 = vector.broadcast %128 : vector<1x16xf32> to vector<4x16xf32>
    %130 = arith.mulf %115, %129 : vector<4x16xf32>
    %131 = vector.extract_strided_slice %86 {offsets = [4, 0], sizes = [4, 16], strides = [1, 1]} : vector<8x16xf32> to vector<4x16xf32>
    %132 = vector.extract_strided_slice %60 {offsets = [4, 0], sizes = [4, 8], strides = [1, 1]} : vector<8x8xf32> to vector<4x8xf32>
    %133 = vector.extract_strided_slice %112 {offsets = [4, 0], sizes = [4, 16], strides = [1, 1]} : vector<8x16xf32> to vector<4x16xf32>
    %cst_33 = arith.constant dense<0.000000e+00> : vector<8x16xf32>
    %134 = tpu.matmul %132, %131, %cst_33 {dimension_numbers = #tpu.dot_dimension_numbers<[0], [0], [1], [1], [0, 1, 1, 1], [], []>} : vector<4x8xf32>, vector<4x16xf32>, vector<8x16xf32> -> vector<8x16xf32>
    %cst_34 = arith.constant dense<0xFF800000> : vector<8xf32>
    %135 = vector.multi_reduction <maximumf>, %134, %cst_34 [1] : vector<8x16xf32> to vector<8xf32>
    %136 = vector.shape_cast %135 : vector<8xf32> to vector<8x1xf32>
    %137 = vector.broadcast %136 : vector<8x1xf32> to vector<8x16xf32>
    %138 = arith.subf %134, %137 : vector<8x16xf32>
    %139 = math.exp %138 : vector<8x16xf32>
    %cst_35 = arith.constant dense<0.000000e+00> : vector<8xf32>
    %140 = vector.multi_reduction <add>, %139, %cst_35 [1] : vector<8x16xf32> to vector<8xf32>
    %141 = vector.shape_cast %140 : vector<8xf32> to vector<8x1xf32>
    %142 = tpu.reciprocal %141 : vector<8x1xf32> -> vector<8x1xf32>
    %143 = vector.broadcast %142 : vector<8x1xf32> to vector<8x16xf32>
    %144 = arith.mulf %139, %143 : vector<8x16xf32>
    %cst_36 = arith.constant dense<0.000000e+00> : vector<16xf32>
    %145 = vector.multi_reduction <add>, %144, %cst_36 [0] : vector<8x16xf32> to vector<16xf32>
    %146 = vector.shape_cast %145 : vector<16xf32> to vector<1x16xf32>
    %147 = vector.broadcast %146 : vector<1x16xf32> to vector<4x16xf32>
    %148 = arith.mulf %133, %147 : vector<4x16xf32>
    %149 = tpu.concatenate %130, %148 in 0 : vector<4x16xf32>, vector<4x16xf32> -> vector<8x16xf32>
    %c0_37 = arith.constant 0 : index
    %c0_38 = arith.constant 0 : index
    %150 = vector.load %arg9[%c0_37, %c0_38] : memref<8x8xf32, #tpu.memory_space<vmem>>, vector<8x8xf32>
    %cst_39 = arith.constant dense<0.000000e+00> : vector<8x16xf32>
    %151 = tpu.matmul %150, %149, %cst_39 {dimension_numbers = #tpu.dot_dimension_numbers<[1], [0], [0], [1], [0, 0, 1, 1], [], []>} : vector<8x8xf32>, vector<8x16xf32>, vector<8x16xf32> -> vector<8x16xf32>
    %c0_40 = arith.constant 0 : index
    %c0_41 = arith.constant 0 : index
    %152 = vector.load %arg10[%c0_40, %c0_41] : memref<8x1xf32, #tpu.memory_space<vmem>>, vector<8x1xf32>
    %153 = vector.broadcast %152 : vector<8x1xf32> to vector<8x16xf32>
    %154 = arith.addf %151, %153 : vector<8x16xf32>
    %c0_42 = arith.constant 0 : index
    %c0_43 = arith.constant 0 : index
    %c0_44 = arith.constant 0 : index
    %155 = vector.load %arg11[%c0_42, %c0_43, %c0_44] : memref<1x8x16xf32, #tpu.memory_space<vmem>>, vector<1x8x16xf32>
    %156 = vector.shape_cast %155 : vector<1x8x16xf32> to vector<8x16xf32>
    %157 = vector.shape_cast %154 : vector<8x16xf32> to vector<1x8x16xf32>
    tpu.vector_store %arg11[%c0_42, %c0_43, %c0_44], %157 {strides = array<i32>} : memref<1x8x16xf32, #tpu.memory_space<vmem>>, vector<1x8x16xf32>,
    return
  }
  func.func @transform_0(%arg0: i32) -> (i32, i32, i32) {
    %c0_i32 = arith.constant 0 : i32
    %c0_i32_0 = arith.constant 0 : i32
    %c0_i32_1 = arith.constant 0 : i32
    return %arg0, %c0_i32, %c0_i32_0 : i32, i32, i32
  }
  func.func @transform_1(%arg0: i32) -> (i32, i32, i32) {
    %c0_i32 = arith.constant 0 : i32
    %c0_i32_0 = arith.constant 0 : i32
    %c0_i32_1 = arith.constant 0 : i32
    return %arg0, %c0_i32, %c0_i32_0 : i32, i32, i32
  }
  func.func @transform_2(%arg0: i32) -> (i32, i32) {
    %c0_i32 = arith.constant 0 : i32
    %c0_i32_0 = arith.constant 0 : i32
    %c0_i32_1 = arith.constant 0 : i32
    return %c0_i32, %c0_i32_0 : i32, i32
  }
  func.func @transform_3(%arg0: i32) -> (i32, i32) {
    %c0_i32 = arith.constant 0 : i32
    %c0_i32_0 = arith.constant 0 : i32
    %c0_i32_1 = arith.constant 0 : i32
    return %c0_i32, %c0_i32_0 : i32, i32
  }
  func.func @transform_4(%arg0: i32) -> (i32, i32) {
    %c0_i32 = arith.constant 0 : i32
    %c0_i32_0 = arith.constant 0 : i32
    %c0_i32_1 = arith.constant 0 : i32
    return %c0_i32, %c0_i32_0 : i32, i32
  }
  func.func @transform_5(%arg0: i32) -> (i32, i32) {
    %c0_i32 = arith.constant 0 : i32
    %c0_i32_0 = arith.constant 0 : i32
    %c0_i32_1 = arith.constant 0 : i32
    return %c0_i32, %c0_i32_0 : i32, i32
  }
  func.func @transform_6(%arg0: i32) -> (i32, i32) {
    %c0_i32 = arith.constant 0 : i32
    %c0_i32_0 = arith.constant 0 : i32
    %c0_i32_1 = arith.constant 0 : i32
    return %c0_i32, %c0_i32_0 : i32, i32
  }
  func.func @transform_7(%arg0: i32) -> (i32, i32) {
    %c0_i32 = arith.constant 0 : i32
    %c0_i32_0 = arith.constant 0 : i32
    %c0_i32_1 = arith.constant 0 : i32
    return %c0_i32, %c0_i32_0 : i32, i32
  }
  func.func @transform_8(%arg0: i32) -> (i32, i32) {
    %c0_i32 = arith.constant 0 : i32
    %c0_i32_0 = arith.constant 0 : i32
    %c0_i32_1 = arith.constant 0 : i32
    return %c0_i32, %c0_i32_0 : i32, i32
  }
  func.func @transform_9(%arg0: i32) -> (i32, i32) {
    %c0_i32 = arith.constant 0 : i32
    %c0_i32_0 = arith.constant 0 : i32
    %c0_i32_1 = arith.constant 0 : i32
    return %c0_i32, %c0_i32_0 : i32, i32
  }
  func.func @transform_10(%arg0: i32) -> (i32, i32, i32) {
    %c0_i32 = arith.constant 0 : i32
    %c0_i32_0 = arith.constant 0 : i32
    %c0_i32_1 = arith.constant 0 : i32
    return %arg0, %c0_i32, %c0_i32_0 : i32, i32, i32
  }
}

</mosaic_0001>

<llo_original>
// kernel: tpu_custom_call.1
$region0: #{tpu_custom_call.1}
  #allocation0 [shape = 'u32[]', space=smem, size = 0x4, offset = 0x4, fixed_abs, tag = 'smem constant byte address 0x4 - core index']
  #allocation1 [shape = 'u32[72,128]{1,0:T(1,128)}', space=vmem, size = 0x9000, scoped, tag = 'internal scratch']
  %s0 = inlined_call_operand.vmem [shape: f32[2,8,16], index: 0, kind: input, shape index: {}]
  %s1 = inlined_call_operand.vmem [shape: f32[2,8,16], index: 1, kind: input, shape index: {}]
  %s2 = inlined_call_operand.hbm [shape: f32[8,8], index: 2, kind: input, shape index: {}]
  %s3 = inlined_call_operand.vmem [shape: f32[8,1], index: 3, kind: input, shape index: {}]
  %s4 = inlined_call_operand.hbm [shape: f32[8,8], index: 4, kind: input, shape index: {}]
  %s5 = inlined_call_operand.vmem [shape: f32[8,1], index: 5, kind: input, shape index: {}]
  %s6 = inlined_call_operand.hbm [shape: f32[8,16], index: 6, kind: input, shape index: {}]
  %s7 = inlined_call_operand.vmem [shape: f32[8,1], index: 7, kind: input, shape index: {}]
  %s8 = inlined_call_operand.hbm [shape: f32[8,8], index: 8, kind: input, shape index: {}]
  %s9 = inlined_call_operand.vmem [shape: f32[8,1], index: 9, kind: input, shape index: {}]
  %s10 = inlined_call_operand.hbm [shape: f32[2,8,16], index: 10, kind: output, shape index: {}]
  %s11 = sld [smem:[#allocation0]]
  $region89: #{tpu_custom_call.1} parent=0
    _
  %s13 = ssub.s32 1, %s11
  %s14 = scalar_select 0, %s13, %s11
  $region1: #{tpu_custom_call.1} parent=0
    #allocation2 [shape = 'u8[4096]{0}', space=vmem, size = 0x1000, scoped, tag = 'input window, operand 2, single buffered']
    #allocation3 [shape = 's32[2]{0}', space=sflag, size = 0x8, scoped, tag = 'scoped memory for tpu_custom_call.1']
    #allocation4 [shape = 's32[2]{0}', space=sflag, size = 0x8, scoped, tag = 'scoped memory for tpu_custom_call.1']
    #allocation5 [shape = 'u8[4096]{0}', space=vmem, size = 0x1000, scoped, tag = 'input window, operand 4, single buffered']
    #allocation6 [shape = 's32[1]{0}', space=sflag, size = 0x4, scoped, tag = 'scoped memory for tpu_custom_call.1']
    #allocation7 [shape = 'u8[4096]{0}', space=vmem, size = 0x1000, scoped, tag = 'input window, operand 6, single buffered']
    #allocation8 [shape = 'u8[4096]{0}', space=vmem, size = 0x1000, scoped, tag = 'input window, operand 8, single buffered']
    #allocation9 [shape = 's32[1]{0}', space=sflag, size = 0x4, scoped, tag = 'scoped memory for tpu_custom_call.1']
    #allocation10 [shape = 'u8[8192]{0}', space=vmem, size = 0x2000, scoped, tag = 'output window, operand 0']
    %15 = vsyncpa [#allocation3], 0
    %16 = vsyncpa [#allocation6], 0
    %17 = vsyncpa [#allocation9], 0
    %18 = vsyncpa [#allocation4], 0
    %s19 = scalar_lea.sflag [#allocation4], 1
    %20 = vsyncpa %s19, 0
    loop: start=0, step=1, limit=4
    $region2: #{tpu_custom_call.1} parent=1 // loop_pre_header
      _
    $region3: #{tpu_custom_call.1} parent=1 // loop_header
      %s22 = sphi 0, %s26
      %p23 = scmp.ge.s32.totalorder %s22, 4
      %s32 = sphi 0, %s34
      %s35 = sphi 0, %s32
      %s36 = sphi 0, %s35
      %s52 = sphi 0, %s36
      %s58 = sphi 0, %s60
      %s61 = sphi 0, %s58
      %s62 = sphi 0, %s61
      %s78 = sphi 0, %s62
      %s82 = sphi 0, %s82
      %s84 = sphi 0, %s82
      %s85 = sphi 0, %s84
      %s99 = sphi 0, %s85
      %s103 = sphi 0, %s103
      %s105 = sphi 0, %s103
      %s106 = sphi 0, %s105
      %s120 = sphi 0, %s106
      %s124 = sphi 0, %s124
      %s126 = sphi 0, %s124
      %s127 = sphi 0, %s126
      %s141 = sphi 0, %s127
      %s145 = sphi 0, %s145
      %s147 = sphi 0, %s145
      %s148 = sphi 0, %s147
      %s162 = sphi 0, %s148
      %s166 = sphi 0, %s166
      %s168 = sphi 0, %s166
      %s169 = sphi 0, %s168
      %s183 = sphi 0, %s169
      %s187 = sphi 0, %s187
      %s189 = sphi 0, %s187
      %s190 = sphi 0, %s189
      %s204 = sphi 0, %s190
      %s208 = sphi 0, %s208
      %s210 = sphi 0, %s208
      %s211 = sphi 0, %s210
      %s225 = sphi 0, %s211
      %s229 = sphi 0, %s229
      %s231 = sphi 0, %s229
      %s232 = sphi 0, %s231
      %s246 = sphi 0, %s232
      %s252 = sphi 0, %s254
      %s255 = sphi 0, %s252
      %s256 = sphi 0, %s255
      %s272 = sphi 0, %s256
    $region4: #{tpu_custom_call.1} parent=1 // loop_header_branch
      %25 = sbr.rel (%p23) target = $region8
    $region5: #{tpu_custom_call.1} parent=1 // loop_body
      %s27 = ssub.s32 %s22, 1
      %s28 = ssub.s32 %s22, 2
      %s29 = sadd.s32 %s22, 1
      %s30 = ssub.s32 %s22, %s29
      %p31 = scmp.eq.s32.totalorder %s30, 0
      %s33 = sadd.s32 %s32, 1
      %s34 = scalar_select %p31, %s32, %s33
      %p37 = pneg %p31
      %p38 = scmp.eq.s32.totalorder %s22, 1
      %p39 = por %p37, %p38
      %p40 = scmp.ne.s32.totalorder %s32, %s35
      %p41 = scmp.eq.s32.totalorder %s22, 0
      %p42 = por %p40, %p41
      %p43 = scmp.ne.s32.totalorder %s32, %s35
      %p44 = scmp.eq.s32.totalorder %s27, 1
      %p45 = por %p43, %p44
      %p46 = scmp.ne.s32.totalorder %s35, %s36
      %p47 = scmp.eq.s32.totalorder %s27, 0
      %p48 = por %p46, %p47
      %p49 = scmp.ne.s32.totalorder %s35, %s36
      %p50 = scmp.eq.s32.totalorder %s28, 1
      %p51 = por %p49, %p50
      %p53 = scmp.ne.s32.totalorder %s36, %s52
      %p54 = scmp.eq.s32.totalorder %s28, 0
      %p55 = por %p53, %p54
      %s56 = ssub.s32 %s22, %s29
      %p57 = scmp.eq.s32.totalorder %s56, 0
      %s59 = sadd.s32 %s58, 1
      %s60 = scalar_select %p57, %s58, %s59
      %p63 = pneg %p57
      %p64 = scmp.eq.s32.totalorder %s22, 1
      %p65 = por %p63, %p64
      %p66 = scmp.ne.s32.totalorder %s58, %s61
      %p67 = scmp.eq.s32.totalorder %s22, 0
      %p68 = por %p66, %p67
      %p69 = scmp.ne.s32.totalorder %s58, %s61
      %p70 = scmp.eq.s32.totalorder %s27, 1
      %p71 = por %p69, %p70
      %p72 = scmp.ne.s32.totalorder %s61, %s62
      %p73 = scmp.eq.s32.totalorder %s27, 0
      %p74 = por %p72, %p73
      %p75 = scmp.ne.s32.totalorder %s61, %s62
      %p76 = scmp.eq.s32.totalorder %s28, 1
      %p77 = por %p75, %p76
      %p79 = scmp.ne.s32.totalorder %s62, %s78
      %p80 = scmp.eq.s32.totalorder %s28, 0
      %p81 = por %p79, %p80
      %s83 = sadd.s32 %s82, 1
      %p86 = scmp.eq.s32.totalorder %s22, 1
      %p87 = scmp.ne.s32.totalorder %s82, %s84
      %p88 = scmp.eq.s32.totalorder %s22, 0
      %p89 = por %p87, %p88
      %p90 = scmp.ne.s32.totalorder %s82, %s84
      %p91 = scmp.eq.s32.totalorder %s27, 1
      %p92 = por %p90, %p91
      %p93 = scmp.ne.s32.totalorder %s84, %s85
      %p94 = scmp.eq.s32.totalorder %s27, 0
      %p95 = por %p93, %p94
      %p96 = scmp.ne.s32.totalorder %s84, %s85
      %p97 = scmp.eq.s32.totalorder %s28, 1
      %p98 = por %p96, %p97
      %p100 = scmp.ne.s32.totalorder %s85, %s99
      %p101 = scmp.eq.s32.totalorder %s28, 0
      %p102 = por %p100, %p101
      %s104 = sadd.s32 %s103, 1
      %p107 = scmp.eq.s32.totalorder %s22, 1
      %p108 = scmp.ne.s32.totalorder %s103, %s105
      %p109 = scmp.eq.s32.totalorder %s22, 0
      %p110 = por %p108, %p109
      %p111 = scmp.ne.s32.totalorder %s103, %s105
      %p112 = scmp.eq.s32.totalorder %s27, 1
      %p113 = por %p111, %p112
      %p114 = scmp.ne.s32.totalorder %s105, %s106
      %p115 = scmp.eq.s32.totalorder %s27, 0
      %p116 = por %p114, %p115
      %p117 = scmp.ne.s32.totalorder %s105, %s106
      %p118 = scmp.eq.s32.totalorder %s28, 1
      %p119 = por %p117, %p118
      %p121 = scmp.ne.s32.totalorder %s106, %s120
      %p122 = scmp.eq.s32.totalorder %s28, 0
      %p123 = por %p121, %p122
      %s125 = sadd.s32 %s124, 1
      %p128 = scmp.eq.s32.totalorder %s22, 1
      %p129 = scmp.ne.s32.totalorder %s124, %s126
      %p130 = scmp.eq.s32.totalorder %s22, 0
      %p131 = por %p129, %p130
      %p132 = scmp.ne.s32.totalorder %s124, %s126
      %p133 = scmp.eq.s32.totalorder %s27, 1
      %p134 = por %p132, %p133
      %p135 = scmp.ne.s32.totalorder %s126, %s127
      %p136 = scmp.eq.s32.totalorder %s27, 0
      %p137 = por %p135, %p136
      %p138 = scmp.ne.s32.totalorder %s126, %s127
      %p139 = scmp.eq.s32.totalorder %s28, 1
      %p140 = por %p138, %p139
      %p142 = scmp.ne.s32.totalorder %s127, %s141
      %p143 = scmp.eq.s32.totalorder %s28, 0
      %p144 = por %p142, %p143
      %s146 = sadd.s32 %s145, 1
      %p149 = scmp.eq.s32.totalorder %s22, 1
      %p150 = scmp.ne.s32.totalorder %s145, %s147
      %p151 = scmp.eq.s32.totalorder %s22, 0
      %p152 = por %p150, %p151
      %p153 = scmp.ne.s32.totalorder %s145, %s147
      %p154 = scmp.eq.s32.totalorder %s27, 1
      %p155 = por %p153, %p154
      %p156 = scmp.ne.s32.totalorder %s147, %s148
      %p157 = scmp.eq.s32.totalorder %s27, 0
      %p158 = por %p156, %p157
      %p159 = scmp.ne.s32.totalorder %s147, %s148
      %p160 = scmp.eq.s32.totalorder %s28, 1
      %p161 = por %p159, %p160
      %p163 = scmp.ne.s32.totalorder %s148, %s162
      %p164 = scmp.eq.s32.totalorder %s28, 0
      %p165 = por %p163, %p164
      %s167 = sadd.s32 %s166, 1
      %p170 = scmp.eq.s32.totalorder %s22, 1
      %p171 = scmp.ne.s32.totalorder %s166, %s168
      %p172 = scmp.eq.s32.totalorder %s22, 0
      %p173 = por %p171, %p172
      %p174 = scmp.ne.s32.totalorder %s166, %s168
      %p175 = scmp.eq.s32.totalorder %s27, 1
      %p176 = por %p174, %p175
      %p177 = scmp.ne.s32.totalorder %s168, %s169
      %p178 = scmp.eq.s32.totalorder %s27, 0
      %p179 = por %p177, %p178
      %p180 = scmp.ne.s32.totalorder %s168, %s169
      %p181 = scmp.eq.s32.totalorder %s28, 1
      %p182 = por %p180, %p181
      %p184 = scmp.ne.s32.totalorder %s169, %s183
      %p185 = scmp.eq.s32.totalorder %s28, 0
      %p186 = por %p184, %p185
      %s188 = sadd.s32 %s187, 1
      %p191 = scmp.eq.s32.totalorder %s22, 1
      %p192 = scmp.ne.s32.totalorder %s187, %s189
      %p193 = scmp.eq.s32.totalorder %s22, 0
      %p194 = por %p192, %p193
      %p195 = scmp.ne.s32.totalorder %s187, %s189
      %p196 = scmp.eq.s32.totalorder %s27, 1
      %p197 = por %p195, %p196
      %p198 = scmp.ne.s32.totalorder %s189, %s190
      %p199 = scmp.eq.s32.totalorder %s27, 0
      %p200 = por %p198, %p199
      %p201 = scmp.ne.s32.totalorder %s189, %s190
      %p202 = scmp.eq.s32.totalorder %s28, 1
      %p203 = por %p201, %p202
      %p205 = scmp.ne.s32.totalorder %s190, %s204
      %p206 = scmp.eq.s32.totalorder %s28, 0
      %p207 = por %p205, %p206
      %s209 = sadd.s32 %s208, 1
      %p212 = scmp.eq.s32.totalorder %s22, 1
      %p213 = scmp.ne.s32.totalorder %s208, %s210
      %p214 = scmp.eq.s32.totalorder %s22, 0
      %p215 = por %p213, %p214
      %p216 = scmp.ne.s32.totalorder %s208, %s210
      %p217 = scmp.eq.s32.totalorder %s27, 1
      %p218 = por %p216, %p217
      %p219 = scmp.ne.s32.totalorder %s210, %s211
      %p220 = scmp.eq.s32.totalorder %s27, 0
      %p221 = por %p219, %p220
      %p222 = scmp.ne.s32.totalorder %s210, %s211
      %p223 = scmp.eq.s32.totalorder %s28, 1
      %p224 = por %p222, %p223
      %p226 = scmp.ne.s32.totalorder %s211, %s225
      %p227 = scmp.eq.s32.totalorder %s28, 0
      %p228 = por %p226, %p227
      %s230 = sadd.s32 %s229, 1
      %p233 = scmp.eq.s32.totalorder %s22, 1
      %p234 = scmp.ne.s32.totalorder %s229, %s231
      %p235 = scmp.eq.s32.totalorder %s22, 0
      %p236 = por %p234, %p235
      %p237 = scmp.ne.s32.totalorder %s229, %s231
      %p238 = scmp.eq.s32.totalorder %s27, 1
      %p239 = por %p237, %p238
      %p240 = scmp.ne.s32.totalorder %s231, %s232
      %p241 = scmp.eq.s32.totalorder %s27, 0
      %p242 = por %p240, %p241
      %p243 = scmp.ne.s32.totalorder %s231, %s232
      %p244 = scmp.eq.s32.totalorder %s28, 1
      %p245 = por %p243, %p244
      %p247 = scmp.ne.s32.totalorder %s232, %s246
      %p248 = scmp.eq.s32.totalorder %s28, 0
      %p249 = por %p247, %p248
      %s250 = ssub.s32 %s22, %s29
      %p251 = scmp.eq.s32.totalorder %s250, 0
      %s253 = sadd.s32 %s252, 1
      %s254 = scalar_select %p251, %s252, %s253
      %p257 = pneg %p251
      %p258 = scmp.eq.s32.totalorder %s22, 1
      %p259 = por %p257, %p258
      %p260 = scmp.ne.s32.totalorder %s252, %s255
      %p261 = scmp.eq.s32.totalorder %s22, 0
      %p262 = por %p260, %p261
      %p263 = scmp.ne.s32.totalorder %s252, %s255
      %p264 = scmp.eq.s32.totalorder %s27, 1
      %p265 = por %p263, %p264
      %p266 = scmp.ne.s32.totalorder %s255, %s256
      %p267 = scmp.eq.s32.totalorder %s27, 0
      %p268 = por %p266, %p267
      %p269 = scmp.ne.s32.totalorder %s255, %s256
      %p270 = scmp.eq.s32.totalorder %s28, 1
      %p271 = por %p269, %p270
      %p273 = scmp.ne.s32.totalorder %s256, %s272
      %p274 = scmp.eq.s32.totalorder %s28, 0
      %p275 = por %p273, %p274
      %p276 = scmp.le.s32.totalorder 1, %s22
      %p277 = scmp.lt.s32.totalorder %s22, 3
      %p278 = pnand %p276, %p277
      %p279 = pneg %p278
      // Predicated region
      $region9: #{tpu_custom_call.1} parent=5 // pred_check
        _
      $region10: #{tpu_custom_call.1} parent=5 // pred_check_branch
        %281 = sbr.rel (%p278) target = $region12
      $region11: #{tpu_custom_call.1} parent=5 // pred_region
        %s282 = ssub.s32 %s22, 1
        // Predicated region
        $region13: #{tpu_custom_call.1} parent=11 // pred_check
          %p283 = pneg %p95
        $region14: #{tpu_custom_call.1} parent=11 // pred_check_branch
          %285 = sbr.rel (%p283) target = $region16
        $region15: #{tpu_custom_call.1} parent=11 // pred_region
          %287 = vsyncadd [#allocation3], 0
          %s289 = sshll.u32 %s2, 4
          %s290 = int_to_ptr.hbm [resolvable:$true] %s289
          %s291 = sshll.u32 [#allocation2], 4
          %s292 = int_to_ptr.vmem [resolvable:$true] %s291
          %294 = dma.hbm_to_vmem [thread:$0]  %s290, 128, %s292, [#allocation3]
        $region16: #{tpu_custom_call.1} parent=11 // pred_fallthru
          _
        // Predicated region
        $region17: #{tpu_custom_call.1} parent=11 // pred_check
          %p295 = pneg %p116
        $region18: #{tpu_custom_call.1} parent=11 // pred_check_branch
          %297 = sbr.rel (%p295) target = $region20
        $region19: #{tpu_custom_call.1} parent=11 // pred_region
          _
        $region20: #{tpu_custom_call.1} parent=11 // pred_fallthru
          _
        // Predicated region
        $region21: #{tpu_custom_call.1} parent=11 // pred_check
          %p298 = pneg %p137
        $region22: #{tpu_custom_call.1} parent=11 // pred_check_branch
          %300 = sbr.rel (%p298) target = $region24
        $region23: #{tpu_custom_call.1} parent=11 // pred_region
          %302 = vsyncadd [#allocation6], 0
          %s304 = sshll.u32 %s4, 4
          %s305 = int_to_ptr.hbm [resolvable:$true] %s304
          %s306 = sshll.u32 [#allocation5], 4
          %s307 = int_to_ptr.vmem [resolvable:$true] %s306
          %309 = dma.hbm_to_vmem [thread:$0]  %s305, 128, %s307, [#allocation6]
        $region24: #{tpu_custom_call.1} parent=11 // pred_fallthru
          _
        // Predicated region
        $region25: #{tpu_custom_call.1} parent=11 // pred_check
          %p310 = pneg %p158
        $region26: #{tpu_custom_call.1} parent=11 // pred_check_branch
          %312 = sbr.rel (%p310) target = $region28
        $region27: #{tpu_custom_call.1} parent=11 // pred_region
          _
        $region28: #{tpu_custom_call.1} parent=11 // pred_fallthru
          _
        // Predicated region
        $region29: #{tpu_custom_call.1} parent=11 // pred_check
          %p313 = pneg %p179
        $region30: #{tpu_custom_call.1} parent=11 // pred_check_branch
          %315 = sbr.rel (%p313) target = $region32
        $region31: #{tpu_custom_call.1} parent=11 // pred_region
          %317 = vsyncadd [#allocation6], 0
          %s319 = sshll.u32 %s6, 4
          %s320 = int_to_ptr.hbm [resolvable:$true] %s319
          %s321 = sshll.u32 [#allocation7], 4
          %s322 = int_to_ptr.vmem [resolvable:$true] %s321
          %324 = dma.hbm_to_vmem [thread:$0]  %s320, 128, %s322, [#allocation6]
        $region32: #{tpu_custom_call.1} parent=11 // pred_fallthru
          _
        // Predicated region
        $region33: #{tpu_custom_call.1} parent=11 // pred_check
          %p325 = pneg %p200
        $region34: #{tpu_custom_call.1} parent=11 // pred_check_branch
          %327 = sbr.rel (%p325) target = $region36
        $region35: #{tpu_custom_call.1} parent=11 // pred_region
          _
        $region36: #{tpu_custom_call.1} parent=11 // pred_fallthru
          _
        // Predicated region
        $region37: #{tpu_custom_call.1} parent=11 // pred_check
          %p328 = pneg %p221
        $region38: #{tpu_custom_call.1} parent=11 // pred_check_branch
          %330 = sbr.rel (%p328) target = $region40
        $region39: #{tpu_custom_call.1} parent=11 // pred_region
          %332 = vsyncadd [#allocation9], 0
          %s334 = sshll.u32 %s8, 4
          %s335 = int_to_ptr.hbm [resolvable:$true] %s334
          %s336 = sshll.u32 [#allocation8], 4
          %s337 = int_to_ptr.vmem [resolvable:$true] %s336
          %339 = dma.hbm_to_vmem [thread:$0]  %s335, 128, %s337, [#allocation9]
        $region40: #{tpu_custom_call.1} parent=11 // pred_fallthru
          _
        // Predicated region
        $region41: #{tpu_custom_call.1} parent=11 // pred_check
          %p340 = pneg %p242
        $region42: #{tpu_custom_call.1} parent=11 // pred_check_branch
          %342 = sbr.rel (%p340) target = $region44
        $region43: #{tpu_custom_call.1} parent=11 // pred_region
          _
        $region44: #{tpu_custom_call.1} parent=11 // pred_fallthru
          _
      $region12: #{tpu_custom_call.1} parent=5 // pred_fallthru
        _
      %p343 = scmp.lt.s32.totalorder %s22, 2
      // Predicated region
      $region45: #{tpu_custom_call.1} parent=5 // pred_check
        %p344 = pneg %p343
      $region46: #{tpu_custom_call.1} parent=5 // pred_check_branch
        %346 = sbr.rel (%p344) target = $region48
      $region47: #{tpu_custom_call.1} parent=5 // pred_region
        // Predicated region
        $region49: #{tpu_custom_call.1} parent=47 // pred_check
          %p347 = pneg %p42
        $region50: #{tpu_custom_call.1} parent=47 // pred_check_branch
          %349 = sbr.rel (%p347) target = $region52
        $region51: #{tpu_custom_call.1} parent=47 // pred_region
          %p350 = scmp.lt.s32.totalorder %s22, 1
          %s351 = scalar_select %p350, %s22, 1
          %s352 = smul.addr %s351, 8
          %s353 = scalar_lea.vmem %s0, %s352
        $region52: #{tpu_custom_call.1} parent=47 // pred_fallthru
          _
        // Predicated region
        $region53: #{tpu_custom_call.1} parent=47 // pred_check
          %p354 = pneg %p68
        $region54: #{tpu_custom_call.1} parent=47 // pred_check_branch
          %356 = sbr.rel (%p354) target = $region56
        $region55: #{tpu_custom_call.1} parent=47 // pred_region
          %p357 = scmp.lt.s32.totalorder %s22, 1
          %s358 = scalar_select %p357, %s22, 1
          %s359 = smul.addr %s358, 8
          %s360 = scalar_lea.vmem %s1, %s359
        $region56: #{tpu_custom_call.1} parent=47 // pred_fallthru
          _
      $region48: #{tpu_custom_call.1} parent=5 // pred_fallthru
        _
      %p361 = scmp.le.s32.totalorder 1, %s22
      %p362 = scmp.lt.s32.totalorder %s22, 3
      %p363 = pnand %p361, %p362
      %p364 = pneg %p363
      // Predicated region
      $region57: #{tpu_custom_call.1} parent=5 // pred_check
        _
      $region58: #{tpu_custom_call.1} parent=5 // pred_check_branch
        %366 = sbr.rel (%p363) target = $region60
      $region59: #{tpu_custom_call.1} parent=5 // pred_region
        %s367 = ssub.s32 %s22, 1
        // Predicated region
        $region61: #{tpu_custom_call.1} parent=59 // pred_check
          %p368 = pneg %p95
        $region62: #{tpu_custom_call.1} parent=59 // pred_check_branch
          %370 = sbr.rel (%p368) target = $region64
        $region63: #{tpu_custom_call.1} parent=59 // pred_region
          %372 = dma.done [#allocation3], 128
        $region64: #{tpu_custom_call.1} parent=59 // pred_fallthru
          _
        // Predicated region
        $region65: #{tpu_custom_call.1} parent=59 // pred_check
          %p373 = pneg %p137
        $region66: #{tpu_custom_call.1} parent=59 // pred_check_branch
          %375 = sbr.rel (%p373) target = $region68
        $region67: #{tpu_custom_call.1} parent=59 // pred_region
          %377 = dma.done [#allocation6], 128
        $region68: #{tpu_custom_call.1} parent=59 // pred_fallthru
          _
        // Predicated region
        $region69: #{tpu_custom_call.1} parent=59 // pred_check
          %p378 = pneg %p179
        $region70: #{tpu_custom_call.1} parent=59 // pred_check_branch
          %380 = sbr.rel (%p378) target = $region72
        $region71: #{tpu_custom_call.1} parent=59 // pred_region
          %382 = dma.done [#allocation6], 128
        $region72: #{tpu_custom_call.1} parent=59 // pred_fallthru
          _
        // Predicated region
        $region73: #{tpu_custom_call.1} parent=59 // pred_check
          %p383 = pneg %p221
        $region74: #{tpu_custom_call.1} parent=59 // pred_check_branch
          %385 = sbr.rel (%p383) target = $region76
        $region75: #{tpu_custom_call.1} parent=59 // pred_region
          %387 = dma.done [#allocation9], 128
        $region76: #{tpu_custom_call.1} parent=59 // pred_fallthru
          _
        %p388 = scmp.lt.s32.totalorder %s27, 1
        %s389 = scalar_select %p388, %s27, 1
        %s390 = smul.addr %s389, 8
        %s391 = scalar_lea.vmem %s0, %s390
        %p392 = pneg %p48
        %p393 = pneg %p45
        %p394 = scmp.lt.s32.totalorder %s27, 1
        %s395 = scalar_select %p394, %s27, 1
        %s396 = smul.addr %s395, 8
        %s397 = scalar_lea.vmem %s1, %s396
        %p398 = pneg %p74
        %p399 = pneg %p71
        %p400 = pneg %p95
        %p401 = pneg %p92
        %p402 = pneg %p116
        %p403 = pneg %p113
        %p404 = pneg %p137
        %p405 = pneg %p134
        %p406 = pneg %p158
        %p407 = pneg %p155
        %p408 = pneg %p179
        %p409 = pneg %p176
        %p410 = pneg %p200
        %p411 = pneg %p197
        %p412 = pneg %p221
        %p413 = pneg %p218
        %p414 = pneg %p242
        %p415 = pneg %p239
        %p416 = pneg %p268
        %p417 = pneg %p265
        %s418 = sand.u32 %s255, 1
        %s419 = scalar_lea.sflag [#allocation4], %s418
        %s420 = sand.u32 %s255, 1
        %s421 = smul.addr %s420, 8
        %s422 = scalar_lea.vmem [#allocation10], %s421
        %p423 = scmp.lt.s32.totalorder %s27, 1
        %s424 = scalar_select %p423, %s27, 1
        %s425 = smul.addr %s424, 8
        %s426 = scalar_lea.vmem %s0, %s425
        %p427 = scmp.lt.s32.totalorder %s27, 1
        %s428 = scalar_select %p427, %s27, 1
        %s429 = smul.addr %s428, 8
        %s430 = scalar_lea.vmem %s1, %s429
        %v431 = vld [vmem:[%s426] sm:$0xff]
        %vm432 = vcmask 130048
        %v433 = vsel %vm432, %v431, 0.0
        %434 = vadd.xlane.f32.xlu0 %v433
        %v435 = vpop.xlane.xlu0 %434
        %v436 = vrot.slane %v435, 4
        %v437 = vadd.f32 %v435, %v436
        %v438 = vrot.slane %v437, 2
        %v439 = vadd.f32 %v437, %v438
        %v440 = vrot.slane %v439, 1
        %v441 = vadd.f32 %v439, %v440
        %s442 = vtos %v441
        %v443 = vstv %s442
        %v444 = vrcp.pop 128.0
        %v445 = vmul.f32 128.0, %v444
        %v446 = vsub.f32 1.0, %v445
        %v447 = vmul.f32 %v444, %v446
        %v448 = vadd.f32 %v444, %v447
        %vm449 = vweird.f32 %v444
        %v450 = vsel %vm449, %v444, %v448
        %v451 = vmul.f32 %v443, %v450
        %v452 = vsub.f32 %v431, %v451
        %v453 = vmul.f32 %v452, %v452
        %v454 = vsel %vm432, %v453, 0.0
        %455 = vadd.xlane.f32.xlu0 %v454
        %v456 = vpop.xlane.xlu0 %455
        %v457 = vrot.slane %v456, 4
        %v458 = vadd.f32 %v456, %v457
        %v459 = vrot.slane %v458, 2
        %v460 = vadd.f32 %v458, %v459
        %v461 = vrot.slane %v460, 1
        %v462 = vadd.f32 %v460, %v461
        %s463 = vtos %v462
        %v464 = vstv %s463
        %v465 = vmul.f32 %v464, %v450
        %v466 = vadd.f32 %v465, 1e-05
        %v467 = vrsqrt.pop %v466
        %v468 = vmul.f32 %v467, %v466
        %v469 = vmul.f32 %v468, %v467
        %v470 = vmul.f32 0.5, %v469
        %v471 = vsub.f32 1.5, %v470
        %v472 = vmul.f32 %v467, %v471
        %vm473 = vweird.f32 %v466
        %vm474 = vweird.f32 %v467
        %vm475 = vmor %vm473, %vm474
        %v476 = vsel %vm475, %v467, %v472
        %v477 = vmul.f32 %v452, %v476
        %v478 = vld [vmem:[%s430] sm:$0xff]
        %v479 = vsel %vm432, %v478, 0.0
        %480 = vadd.xlane.f32.xlu0 %v479
        %v481 = vpop.xlane.xlu0 %480
        %v482 = vrcp.pop 16.0
        %v483 = vmul.f32 16.0, %v482
        %v484 = vsub.f32 1.0, %v483
        %v485 = vmul.f32 %v482, %v484
        %v486 = vadd.f32 %v482, %v485
        %vm487 = vweird.f32 %v482
        %v488 = vsel %vm487, %v482, %v486
        %v489 = vmul.f32 %v481, %v488
        %v490 = vsub.f32 %v478, %v489
        %v491 = vmul.f32 %v490, %v490
        %v492 = vsel %vm432, %v491, 0.0
        %493 = vadd.xlane.f32.xlu0 %v492
        %v494 = vpop.xlane.xlu0 %493
        %v495 = vmul.f32 %v494, %v488
        %v496 = vadd.f32 %v495, 1e-05
        %v497 = vrsqrt.pop %v496
        %v498 = vmul.f32 %v497, %v496
        %v499 = vmul.f32 %v498, %v497
        %v500 = vmul.f32 0.5, %v499
        %v501 = vsub.f32 1.5, %v500
        %v502 = vmul.f32 %v497, %v501
        %vm503 = vweird.f32 %v496
        %vm504 = vweird.f32 %v497
        %vm505 = vmor %vm503, %vm504
        %v506 = vsel %vm505, %v497, %v502
        %v507 = vmul.f32 %v490, %v506
        %v508 = vld [vmem:[#allocation2] sm:$0xff]
        %v509 = vld [vmem:[%s3] sm:$0xff]
        %511 = vset.pattern.permute.xlu0 0
        %512 = vperm.xlu0 %511, %v509
        %v513 = vpop.permute.xlu0 %512
        %vm515 = vcmask 64512
        %v517 = vsel %vm515, %v508, 0
        %519 = vmatpush.msra.mxu0 0.0
        %520 = vmatpush.msra.mxu0 0.0
        %521 = vmatpush.msra.mxu0 0.0
        %522 = vmatpush.msra.mxu0 0.0
        %523 = vmatpush.msra.mxu0 0.0
        %524 = vmatpush.msra.mxu0 0.0
        %525 = vmatpush.msra.mxu0 0.0
        %526 = vmatpush.msra.mxu0 0.0
        %527 = vmatpush.msra.mxu0 0.0
        %528 = vmatpush.msra.mxu0 0.0
        %529 = vmatpush.msra.mxu0 0.0
        %530 = vmatpush.msra.mxu0 0.0
        %531 = vmatpush.msra.mxu0 0.0
        %532 = vmatpush.msra.mxu0 0.0
        %533 = vmatpush.msra.mxu0 0.0
        %534 = vmatpush.msra.mxu0 %v477
        %535 = vmatmul.f32.gmra.mxu0 %v517
        %v536 = vpop.f32.mrf.mxu0
        %v537 = vadd.f32 %v513, %v536
        %538 = vdwg.mxu0
        %v539 = vld [vmem:[#allocation5] sm:$0xff]
        %v540 = vld [vmem:[%s5] sm:$0xff]
        %542 = vset.pattern.permute.xlu0 0
        %543 = vperm.xlu0 %542, %v540
        %v544 = vpop.permute.xlu0 %543
        %v547 = vsel %vm515, %v539, 0
        %549 = vmatpush.msra.mxu0 0.0
        %550 = vmatpush.msra.mxu0 0.0
        %551 = vmatpush.msra.mxu0 0.0
        %552 = vmatpush.msra.mxu0 0.0
        %553 = vmatpush.msra.mxu0 0.0
        %554 = vmatpush.msra.mxu0 0.0
        %555 = vmatpush.msra.mxu0 0.0
        %556 = vmatpush.msra.mxu0 0.0
        %557 = vmatpush.msra.mxu0 0.0
        %558 = vmatpush.msra.mxu0 0.0
        %559 = vmatpush.msra.mxu0 0.0
        %560 = vmatpush.msra.mxu0 0.0
        %561 = vmatpush.msra.mxu0 0.0
        %562 = vmatpush.msra.mxu0 0.0
        %563 = vmatpush.msra.mxu0 0.0
        %564 = vmatpush.msra.mxu0 %v477
        %565 = vmatmul.f32.gmra.mxu0 %v547
        %v566 = vpop.f32.mrf.mxu0
        %v567 = vadd.f32 %v544, %v566
        %568 = vdwg.mxu0
        %v569 = vld [vmem:[#allocation7] sm:$0xff]
        %v570 = vld [vmem:[%s7] sm:$0xff]
        %572 = vset.pattern.permute.xlu0 0
        %573 = vperm.xlu0 %572, %v570
        %v574 = vpop.permute.xlu0 %573
        %v577 = vsel %vm432, %v569, 0
        %v580 = vsel %vm432, %v507, 0
        %582 = vmatpush.xpose.msra.mxu0 0.0
        %583 = vmatpush.xpose.msra.mxu0 0.0
        %584 = vmatpush.xpose.msra.mxu0 0.0
        %585 = vmatpush.xpose.msra.mxu0 0.0
        %586 = vmatpush.xpose.msra.mxu0 0.0
        %587 = vmatpush.xpose.msra.mxu0 0.0
        %588 = vmatpush.xpose.msra.mxu0 0.0
        %589 = vmatpush.xpose.msra.mxu0 0.0
        %590 = vmatpush.xpose.msra.mxu0 0.0
        %591 = vmatpush.xpose.msra.mxu0 0.0
        %592 = vmatpush.xpose.msra.mxu0 0.0
        %593 = vmatpush.xpose.msra.mxu0 0.0
        %594 = vmatpush.xpose.msra.mxu0 0.0
        %595 = vmatpush.xpose.msra.mxu0 0.0
        %596 = vmatpush.xpose.msra.mxu0 0.0
        %597 = vmatpush.xpose.msra.mxu0 %v580
        %598 = vmatmul.f32.gmra.mxu0 %v577
        %v599 = vpop.f32.mrf.mxu0
        %v600 = vadd.f32 %v574, %v599
        %601 = vdwg.mxu0
        %602 = vxpose.xlu0.b32.start [1/16] %v537, 128
        %603 = vxpose.xlu0.b32.cont [2/16] 0.0, 128
        %604 = vxpose.xlu0.b32.cont [3/16] 0.0, 128
        %605 = vxpose.xlu0.b32.cont [4/16] 0.0, 128
        %606 = vxpose.xlu0.b32.cont [5/16] 0.0, 128
        %607 = vxpose.xlu0.b32.cont [6/16] 0.0, 128
        %608 = vxpose.xlu0.b32.cont [7/16] 0.0, 128
        %609 = vxpose.xlu0.b32.cont [8/16] 0.0, 128
        %610 = vxpose.xlu0.b32.cont [9/16] 0.0, 128
        %611 = vxpose.xlu0.b32.cont [10/16] 0.0, 128
        %612 = vxpose.xlu0.b32.cont [11/16] 0.0, 128
        %613 = vxpose.xlu0.b32.cont [12/16] 0.0, 128
        %614 = vxpose.xlu0.b32.cont [13/16] 0.0, 128
        %615 = vxpose.xlu0.b32.cont [14/16] 0.0, 128
        %616 = vxpose.xlu0.b32.cont [15/16] 0.0, 128
        %617 = vxpose.xlu0.b32.end [16/16] 0.0, 128
        %v618 = vpop.trf.xlu0
        %v619 = vpop.trf.xlu0
        %v620 = vpop.trf.xlu0
        %v621 = vpop.trf.xlu0
        %v622 = vpop.trf.xlu0
        %v623 = vpop.trf.xlu0
        %v624 = vpop.trf.xlu0
        %v625 = vpop.trf.xlu0
        %v626 = vpop.trf.xlu0
        %v627 = vpop.trf.xlu0
        %v628 = vpop.trf.xlu0
        %v629 = vpop.trf.xlu0
        %v630 = vpop.trf.xlu0
        %v631 = vpop.trf.xlu0
        %v632 = vpop.trf.xlu0
        %v633 = vpop.trf.xlu0
        %v635 = vrot.slane %v618, 1
        %636 = vrot.lane.b32.xlu0 %v635, 8
        %v637 = vpop.permute.xlu0 %636
        %v639 = vsel %vm515, %v618, %v637
        %v641 = vrot.slane %v619, 1
        %642 = vrot.lane.b32.xlu0 %v641, 8
        %v643 = vpop.permute.xlu0 %642
        %v645 = vsel %vm515, %v619, %v643
        %v647 = vrot.slane %v639, 1
        %v649 = vrot.slane %v639, 2
        %v651 = vrot.slane %v639, 3
        %v654 = vrot.slane %v645, 4
        %v656 = vrot.slane %v645, 5
        %v658 = vrot.slane %v645, 6
        %v660 = vrot.slane %v645, 7
        %vm662 = vcmask 1040384
        %v663 = vsel %vm662, %v639, %v647
        %vm664 = vcmask 1041408
        %v665 = vsel %vm664, %v663, %v649
        %vm666 = vcmask 1042432
        %v667 = vsel %vm666, %v665, %v651
        %vm668 = vcmask 1043456
        %v669 = vsel %vm668, %v667, %v654
        %vm670 = vcmask 1044480
        %v671 = vsel %vm670, %v669, %v656
        %vm672 = vcmask 1045504
        %v673 = vsel %vm672, %v671, %v658
        %vm674 = vcmask 1046528
        %v675 = vsel %vm674, %v673, %v660
        %676 = vxpose.xlu0.b32.start [1/16] %v567, 128
        %677 = vxpose.xlu0.b32.cont [2/16] 0.0, 128
        %678 = vxpose.xlu0.b32.cont [3/16] 0.0, 128
        %679 = vxpose.xlu0.b32.cont [4/16] 0.0, 128
        %680 = vxpose.xlu0.b32.cont [5/16] 0.0, 128
        %681 = vxpose.xlu0.b32.cont [6/16] 0.0, 128
        %682 = vxpose.xlu0.b32.cont [7/16] 0.0, 128
        %683 = vxpose.xlu0.b32.cont [8/16] 0.0, 128
        %684 = vxpose.xlu0.b32.cont [9/16] 0.0, 128
        %685 = vxpose.xlu0.b32.cont [10/16] 0.0, 128
        %686 = vxpose.xlu0.b32.cont [11/16] 0.0, 128
        %687 = vxpose.xlu0.b32.cont [12/16] 0.0, 128
        %688 = vxpose.xlu0.b32.cont [13/16] 0.0, 128
        %689 = vxpose.xlu0.b32.cont [14/16] 0.0, 128
        %690 = vxpose.xlu0.b32.cont [15/16] 0.0, 128
        %691 = vxpose.xlu0.b32.end [16/16] 0.0, 128
        %v692 = vpop.trf.xlu0
        %v693 = vpop.trf.xlu0
        %v694 = vpop.trf.xlu0
        %v695 = vpop.trf.xlu0
        %v696 = vpop.trf.xlu0
        %v697 = vpop.trf.xlu0
        %v698 = vpop.trf.xlu0
        %v699 = vpop.trf.xlu0
        %v700 = vpop.trf.xlu0
        %v701 = vpop.trf.xlu0
        %v702 = vpop.trf.xlu0
        %v703 = vpop.trf.xlu0
        %v704 = vpop.trf.xlu0
        %v705 = vpop.trf.xlu0
        %v706 = vpop.trf.xlu0
        %v707 = vpop.trf.xlu0
        %v709 = vrot.slane %v692, 1
        %710 = vrot.lane.b32.xlu0 %v709, 8
        %v711 = vpop.permute.xlu0 %710
        %v713 = vsel %vm515, %v692, %v711
        %v715 = vrot.slane %v693, 1
        %716 = vrot.lane.b32.xlu0 %v715, 8
        %v717 = vpop.permute.xlu0 %716
        %v719 = vsel %vm515, %v693, %v717
        %v721 = vrot.slane %v713, 1
        %v723 = vrot.slane %v713, 2
        %v725 = vrot.slane %v713, 3
        %v728 = vrot.slane %v719, 4
        %v730 = vrot.slane %v719, 5
        %v732 = vrot.slane %v719, 6
        %v734 = vrot.slane %v719, 7
        %v736 = vsel %vm662, %v713, %v721
        %v737 = vsel %vm664, %v736, %v723
        %v738 = vsel %vm666, %v737, %v725
        %v739 = vsel %vm668, %v738, %v728
        %v740 = vsel %vm670, %v739, %v730
        %v741 = vsel %vm672, %v740, %v732
        %v742 = vsel %vm674, %v741, %v734
        %743 = vxpose.xlu0.b32.start [1/16] %v600, 128
        %744 = vxpose.xlu0.b32.cont [2/16] 0.0, 128
        %745 = vxpose.xlu0.b32.cont [3/16] 0.0, 128
        %746 = vxpose.xlu0.b32.cont [4/16] 0.0, 128
        %747 = vxpose.xlu0.b32.cont [5/16] 0.0, 128
        %748 = vxpose.xlu0.b32.cont [6/16] 0.0, 128
        %749 = vxpose.xlu0.b32.cont [7/16] 0.0, 128
        %750 = vxpose.xlu0.b32.cont [8/16] 0.0, 128
        %751 = vxpose.xlu0.b32.cont [9/16] 0.0, 128
        %752 = vxpose.xlu0.b32.cont [10/16] 0.0, 128
        %753 = vxpose.xlu0.b32.cont [11/16] 0.0, 128
        %754 = vxpose.xlu0.b32.cont [12/16] 0.0, 128
        %755 = vxpose.xlu0.b32.cont [13/16] 0.0, 128
        %756 = vxpose.xlu0.b32.cont [14/16] 0.0, 128
        %757 = vxpose.xlu0.b32.cont [15/16] 0.0, 128
        %758 = vxpose.xlu0.b32.end [16/16] 0.0, 128
        %v759 = vpop.trf.xlu0
        %v760 = vpop.trf.xlu0
        %v761 = vpop.trf.xlu0
        %v762 = vpop.trf.xlu0
        %v763 = vpop.trf.xlu0
        %v764 = vpop.trf.xlu0
        %v765 = vpop.trf.xlu0
        %v766 = vpop.trf.xlu0
        %v767 = vpop.trf.xlu0
        %v768 = vpop.trf.xlu0
        %v769 = vpop.trf.xlu0
        %v770 = vpop.trf.xlu0
        %v771 = vpop.trf.xlu0
        %v772 = vpop.trf.xlu0
        %v773 = vpop.trf.xlu0
        %v774 = vpop.trf.xlu0
        %vm775 = vcmask 31744
        %v777 = vsel %vm775, %v759, 0
        %v780 = vsel %vm668, %v675, 0
        %782 = vmatpush.msra.mxu0 0.0
        %783 = vmatpush.msra.mxu0 0.0
        %784 = vmatpush.msra.mxu0 0.0
        %785 = vmatpush.msra.mxu0 0.0
        %786 = vmatpush.msra.mxu0 0.0
        %787 = vmatpush.msra.mxu0 0.0
        %788 = vmatpush.msra.mxu0 0.0
        %789 = vmatpush.msra.mxu0 0.0
        %790 = vmatpush.msra.mxu0 0.0
        %791 = vmatpush.msra.mxu0 0.0
        %792 = vmatpush.msra.mxu0 0.0
        %793 = vmatpush.msra.mxu0 0.0
        %794 = vmatpush.msra.mxu0 0.0
        %795 = vmatpush.msra.mxu0 0.0
        %796 = vmatpush.msra.mxu0 0.0
        %797 = vmatpush.msra.mxu0 %v780
        %798 = vmatmul.f32.gmra.mxu0 %v777
        %v799 = vpop.f32.mrf.mxu0
        %v800 = vadd.f32 0.0, %v799
        %801 = vdwg.mxu0
        %v802 = vsel %vm432, %v800, -inf
        %803 = vmax.xlane.f32.xlu0 %v802
        %v804 = vpop.xlane.xlu0 %803
        %v805 = vsub.f32 %v800, %v804
        %v806 = vmul.f32 %v805, 1.442695
        %v807 = vpow.pop %v806
        %v808 = vsel %vm432, %v807, 0.0
        %809 = vadd.xlane.f32.xlu0 %v808
        %v810 = vpop.xlane.xlu0 %809
        %v811 = vrcp.pop %v810
        %v812 = vmul.f32 %v810, %v811
        %v813 = vsub.f32 1.0, %v812
        %v814 = vmul.f32 %v811, %v813
        %v815 = vadd.f32 %v811, %v814
        %vm816 = vweird.f32 %v810
        %vm817 = vweird.f32 %v811
        %vm818 = vmor %vm816, %vm817
        %v819 = vsel %vm818, %v811, %v815
        %v820 = vand.u32 2147483647, %v810
        %vm821 = vcmp.eq.f32.partialorder %v820, 8.507059e+37
        %v822 = vand.u32 %v810, 2147483648
        %v823 = vor.u32 1.1754944e-38, %v822
        %v824 = vsel %vm821, %v823, %v819
        %v825 = vmul.f32 %v807, %v824
        %v826 = vsel %vm432, %v825, 0.0
        %v827 = vrot.slane %v826, 4
        %v828 = vadd.f32 %v826, %v827
        %v829 = vrot.slane %v828, 2
        %v830 = vadd.f32 %v828, %v829
        %v831 = vrot.slane %v830, 1
        %v832 = vadd.f32 %v830, %v831
        %v833 = vmul.f32 %v742, %v832
        %v835 = vrot.slane %v600, 4
        %837 = vxpose.xlu0.b32.start [1/16] %v835, 128
        %838 = vxpose.xlu0.b32.cont [2/16] 0.0, 128
        %839 = vxpose.xlu0.b32.cont [3/16] 0.0, 128
        %840 = vxpose.xlu0.b32.cont [4/16] 0.0, 128
        %841 = vxpose.xlu0.b32.cont [5/16] 0.0, 128
        %842 = vxpose.xlu0.b32.cont [6/16] 0.0, 128
        %843 = vxpose.xlu0.b32.cont [7/16] 0.0, 128
        %844 = vxpose.xlu0.b32.cont [8/16] 0.0, 128
        %845 = vxpose.xlu0.b32.cont [9/16] 0.0, 128
        %846 = vxpose.xlu0.b32.cont [10/16] 0.0, 128
        %847 = vxpose.xlu0.b32.cont [11/16] 0.0, 128
        %848 = vxpose.xlu0.b32.cont [12/16] 0.0, 128
        %849 = vxpose.xlu0.b32.cont [13/16] 0.0, 128
        %850 = vxpose.xlu0.b32.cont [14/16] 0.0, 128
        %851 = vxpose.xlu0.b32.cont [15/16] 0.0, 128
        %852 = vxpose.xlu0.b32.end [16/16] 0.0, 128
        %v853 = vpop.trf.xlu0
        %v854 = vpop.trf.xlu0
        %v855 = vpop.trf.xlu0
        %v856 = vpop.trf.xlu0
        %v857 = vpop.trf.xlu0
        %v858 = vpop.trf.xlu0
        %v859 = vpop.trf.xlu0
        %v860 = vpop.trf.xlu0
        %v861 = vpop.trf.xlu0
        %v862 = vpop.trf.xlu0
        %v863 = vpop.trf.xlu0
        %v864 = vpop.trf.xlu0
        %v865 = vpop.trf.xlu0
        %v866 = vpop.trf.xlu0
        %v867 = vpop.trf.xlu0
        %v868 = vpop.trf.xlu0
        %v869 = vrot.slane %v675, 4
        %v871 = vsel %vm775, %v853, 0
        %v873 = vsel %vm668, %v869, 0
        %875 = vmatpush.msra.mxu0 0.0
        %876 = vmatpush.msra.mxu0 0.0
        %877 = vmatpush.msra.mxu0 0.0
        %878 = vmatpush.msra.mxu0 0.0
        %879 = vmatpush.msra.mxu0 0.0
        %880 = vmatpush.msra.mxu0 0.0
        %881 = vmatpush.msra.mxu0 0.0
        %882 = vmatpush.msra.mxu0 0.0
        %883 = vmatpush.msra.mxu0 0.0
        %884 = vmatpush.msra.mxu0 0.0
        %885 = vmatpush.msra.mxu0 0.0
        %886 = vmatpush.msra.mxu0 0.0
        %887 = vmatpush.msra.mxu0 0.0
        %888 = vmatpush.msra.mxu0 0.0
        %889 = vmatpush.msra.mxu0 0.0
        %890 = vmatpush.msra.mxu0 %v873
        %891 = vmatmul.f32.gmra.mxu0 %v871
        %v892 = vpop.f32.mrf.mxu0
        %v893 = vadd.f32 0.0, %v892
        %894 = vdwg.mxu0
        %v895 = vsel %vm432, %v893, -inf
        %896 = vmax.xlane.f32.xlu0 %v895
        %v897 = vpop.xlane.xlu0 %896
        %v898 = vsub.f32 %v893, %v897
        %v899 = vmul.f32 %v898, 1.442695
        %v900 = vpow.pop %v899
        %v901 = vsel %vm432, %v900, 0.0
        %902 = vadd.xlane.f32.xlu0 %v901
        %v903 = vpop.xlane.xlu0 %902
        %v904 = vrcp.pop %v903
        %v905 = vmul.f32 %v903, %v904
        %v906 = vsub.f32 1.0, %v905
        %v907 = vmul.f32 %v904, %v906
        %v908 = vadd.f32 %v904, %v907
        %vm909 = vweird.f32 %v903
        %vm910 = vweird.f32 %v904
        %vm911 = vmor %vm909, %vm910
        %v912 = vsel %vm911, %v904, %v908
        %v913 = vand.u32 2147483647, %v903
        %vm914 = vcmp.eq.f32.partialorder %v913, 8.507059e+37
        %v915 = vand.u32 %v903, 2147483648
        %v916 = vor.u32 1.1754944e-38, %v915
        %v917 = vsel %vm914, %v916, %v912
        %v918 = vmul.f32 %v900, %v917
        %v919 = vsel %vm432, %v918, 0.0
        %v920 = vrot.slane %v919, 4
        %v921 = vadd.f32 %v919, %v920
        %v922 = vrot.slane %v921, 2
        %v923 = vadd.f32 %v921, %v922
        %v924 = vrot.slane %v923, 1
        %v925 = vadd.f32 %v923, %v924
        %v926 = vmul.f32 %v742, %v925
        %v927 = vsel %vm668, %v833, %v926
        %v928 = vld [vmem:[#allocation8] sm:$0xff]
        %v929 = vld [vmem:[%s9] sm:$0xff]
        %931 = vset.pattern.permute.xlu0 0
        %932 = vperm.xlu0 %931, %v929
        %v933 = vpop.permute.xlu0 %932
        %v936 = vsel %vm515, %v928, 0
        %938 = vmatpush.msra.mxu0 0.0
        %939 = vmatpush.msra.mxu0 0.0
        %940 = vmatpush.msra.mxu0 0.0
        %941 = vmatpush.msra.mxu0 0.0
        %942 = vmatpush.msra.mxu0 0.0
        %943 = vmatpush.msra.mxu0 0.0
        %944 = vmatpush.msra.mxu0 0.0
        %945 = vmatpush.msra.mxu0 0.0
        %946 = vmatpush.msra.mxu0 0.0
        %947 = vmatpush.msra.mxu0 0.0
        %948 = vmatpush.msra.mxu0 0.0
        %949 = vmatpush.msra.mxu0 0.0
        %950 = vmatpush.msra.mxu0 0.0
        %951 = vmatpush.msra.mxu0 0.0
        %952 = vmatpush.msra.mxu0 0.0
        %953 = vmatpush.msra.mxu0 %v927
        %954 = vmatmul.f32.gmra.mxu0 %v936
        %v955 = vpop.f32.mrf.mxu0
        %v956 = vadd.f32 %v933, %v955
        %957 = vdwg.mxu0
        %958 = vst.msk [vmem:[%s422] sm:$0xff] %vm432, %v956
        %s959 = sand.u32 %s255, 1
        %s960 = scalar_lea.sflag [#allocation4], %s959
        %s961 = sand.u32 %s255, 1
        %s962 = smul.addr %s961, 8
        %s963 = scalar_lea.vmem [#allocation10], %s962
        // Predicated region
        $region77: #{tpu_custom_call.1} parent=59 // pred_check
          %p964 = pneg %p265
        $region78: #{tpu_custom_call.1} parent=59 // pred_check_branch
          %966 = sbr.rel (%p964) target = $region80
        $region79: #{tpu_custom_call.1} parent=59 // pred_region
          %968 = vsyncadd %s960, 0
          %s969 = smul.addr %s27, 8
          %s970 = scalar_lea.hbm %s10, %s969
          %s972 = sshll.u32 %s963, 4
          %s973 = int_to_ptr.vmem [resolvable:$true] %s972
          %s974 = sshll.u32 %s970, 4
          %s975 = int_to_ptr.hbm [resolvable:$true] %s974
          %977 = dma.vmem_to_hbm [thread:$0]  %s973, 128, %s975, %s960
        $region80: #{tpu_custom_call.1} parent=59 // pred_fallthru
          _
      $region60: #{tpu_custom_call.1} parent=5 // pred_fallthru
        _
      %p978 = scmp.le.s32.totalorder 2, %s22
      // Predicated region
      $region81: #{tpu_custom_call.1} parent=5 // pred_check
        %p979 = pneg %p978
      $region82: #{tpu_custom_call.1} parent=5 // pred_check_branch
        %981 = sbr.rel (%p979) target = $region84
      $region83: #{tpu_custom_call.1} parent=5 // pred_region
        %s982 = ssub.s32 %s22, 2
        // Predicated region
        $region85: #{tpu_custom_call.1} parent=83 // pred_check
          %p983 = pneg %p271
        $region86: #{tpu_custom_call.1} parent=83 // pred_check_branch
          %985 = sbr.rel (%p983) target = $region88
        $region87: #{tpu_custom_call.1} parent=83 // pred_region
          %s986 = sand.u32 %s256, 1
          %s987 = scalar_lea.sflag [#allocation4], %s986
          %s988 = sand.u32 %s256, 1
          %s989 = smul.addr %s988, 8
          %s990 = scalar_lea.vmem [#allocation10], %s989
          %992 = dma.done %s987, 128
        $region88: #{tpu_custom_call.1} parent=83 // pred_fallthru
          _
      $region84: #{tpu_custom_call.1} parent=5 // pred_fallthru
        _
    $region6: #{tpu_custom_call.1} parent=1 // loop_footer
      %s26 = sadd.s32 1, %s22
    $region7: #{tpu_custom_call.1} parent=1 // loop_footer_branch
      %21 = sbr.rel target = $region3
    $region8: #{tpu_custom_call.1} parent=1 // loop_exit
      _
    %993 = vsyncpa [#allocation3], 1
    %s994 = scalar_lea.sflag [#allocation3], 1
    %995 = vsyncpa %s994, 1
    %996 = vsyncpa [#allocation6], 1
    %997 = vsyncpa [#allocation9], 1
    %998 = vsyncpa [#allocation4], 1
    %s999 = scalar_lea.sflag [#allocation4], 1
    %1000 = vsyncpa %s999, 1

</llo_original>
